<compile_context>
chip_gen: v5e
topology: v5e:2x2
jax: 0.10.0
libtpu: 0.0.40
codegen_flags: <defaults>
</compile_context>

<pallas_src>
import functools
import math

import jax
import jax.numpy as jnp
from jax.experimental import pallas as pl
from jax.experimental.pallas import tpu as pltpu


# --------------------------------------------------------------------------- #
# Kernels
# --------------------------------------------------------------------------- #
def _pe_add_kernel_3d(x_ref, pe_ref, o_ref):
    # x_ref: (ts, B, D), pe_ref: (ts, 1, D) -> sublane broadcast over batch.
    o_ref[...] = x_ref[...] + pe_ref[...]


def _pe_add_kernel_2d(x_ref, pe_ref, o_ref, *, batch):
    # x_ref/o_ref: (ts, B*D) lane-collapsed tiles; pe_ref: (ts, 1, D).
    # Tile PE B times along the lane axis so it lines up with the collapsed
    # (b, d) -> b*D + d layout.  XLU/VPU have plenty of slack in this kernel.
    pe = pe_ref[...][:, 0, :]                      # (ts, D)
    o_ref[...] = x_ref[...] + jnp.tile(pe, (1, batch))


# --------------------------------------------------------------------------- #
# PE table (parameter setup / glue — outside the hot path)
# --------------------------------------------------------------------------- #
def make_sinusoidal_pe(max_len: int, d_model: int, dtype=jnp.float32):
    """Deterministic sinusoidal PE table, shape (max_len, 1, d_model).

    Build it directly in the compute dtype so input_pe never has to cast it.
    """
    position = jnp.arange(max_len, dtype=jnp.float32)[:, None]
    div_term = jnp.exp(
        jnp.arange(0, d_model, 2, dtype=jnp.float32)
        * (-math.log(10000.0) / d_model)
    )
    pe = jnp.zeros((max_len, d_model), dtype=jnp.float32)
    pe = pe.at[:, 0::2].set(jnp.sin(position * div_term))
    pe = pe.at[:, 1::2].set(jnp.cos(position * div_term))
    return pe[:, None, :].astype(dtype)            # (max_len, 1, d_model)


# --------------------------------------------------------------------------- #
# Tiling policy
# --------------------------------------------------------------------------- #
def _device_tuning():
    """(target_tile_bytes, min_grid_steps, vmem_limit_bytes or None) per chip."""
    kind = ""
    try:
        kind = jax.devices()[0].device_kind.lower()
    except Exception:  # pragma: no cover - e.g. interpret mode / no devices
        pass
    if "v7" in kind or "7x" in kind:
        # 3.2 TB/s: 2 MiB tiles drain in ~1.3 us -> per-step overhead visible.
        # 8 MiB tiles double-buffered (x + out + PE) ~ 34 MiB, above the 32 MiB
        # scoped default but well under the 64 MiB physical VMEM.
        return 8 << 20, 8, 48 << 20
    if "v6" in kind:
        # 4 MiB tiles stay under the 32 MiB scoped default with double-buffering.
        return 4 << 20, 4, None
    # v5e / unknown: 16 MiB scoped default; 2 MiB tiles already ~85% roofline.
    return 2 << 20, 4, None


def _choose_seq_tile(S: int, row_bytes: int, target_tile_bytes: int,
                     min_steps: int, sublane: int) -> int:
    """Pick how many sequence rows one grid step processes."""
    # Largest tile under the byte target.
    ts = min(S, max(1, target_tile_bytes // max(1, row_bytes)))
    # Prefer >= min_steps grid steps so DMA-in / compute / DMA-out pipeline and
    # the "parallel" axis can be sharded across v7x's two TensorCores.
    ts = min(ts, max(1, pl.cdiv(S, min_steps)))
    # Keep ts a multiple of the sublane packing (8 f32 / 16 bf16) for dense
    # vregs and unmasked stores; never below one sublane group.  For tiny S
    # this may collapse back to a single full-S tile, which is fine.
    if ts < S:
        ts = max(sublane, (ts // sublane) * sublane)
        ts = min(ts, S)
    return ts


# --------------------------------------------------------------------------- #
# Forward: y = x + PE[:S]
# --------------------------------------------------------------------------- #
def input_pe(x: jax.Array, pe_table: jax.Array, *, donate_x: bool = False) -> jax.Array:
    """InputPE.forward: y = pos_encoder(x) = x + PE[:S], broadcast over batch.

    x:        (S, B, D)
    pe_table: (max_len, 1, D) — build with make_sinusoidal_pe(dtype=x.dtype).
    """
    S, B, D = x.shape
    max_len = pe_table.shape[0]
    if S > max_len:
        raise ValueError(f"sequence length {S} exceeds PE table max_len {max_len}")
    if pe_table.dtype != x.dtype:
        # Slow path: a per-call cast is an extra HBM pass over the table.
        # Construct the table in the compute dtype to avoid it.
        pe_table = pe_table.astype(x.dtype)

    itemsize = jnp.dtype(x.dtype).itemsize
    sublane = (8 * 4) // itemsize                  # 8 f32, 16 bf16, 32 int8
    target_bytes, min_steps, vmem_limit = _device_tuning()
    row_bytes = B * D * itemsize
    ts = _choose_seq_tile(S, row_bytes, target_bytes, min_steps, sublane)
    grid = (pl.cdiv(S, ts),)

    compiler_params = pltpu.CompilerParams(
        dimension_semantics=("parallel",),
        vmem_limit_bytes=vmem_limit,
    )
    io_aliases = {0: 0} if donate_x else {}

    # Use the lane-collapsed layout whenever the natural (B, D) minor dims
    # would leave sublanes empty (small B) or force masked stores (D % 128).
    collapsed = (D % 128 != 0) or (B < sublane)

    if collapsed:
        x2 = x.reshape(S, B * D)                   # contiguous => free reshape
        out2 = pl.pallas_call(
            functools.partial(_pe_add_kernel_2d, batch=B),
            out_shape=jax.ShapeDtypeStruct((S, B * D), x.dtype),
            grid=grid,
            in_specs=[
                pl.BlockSpec((ts, B * D), lambda i: (i, 0)),
                pl.BlockSpec((ts, 1, D), lambda i: (i, 0, 0)),
            ],
            out_specs=pl.BlockSpec((ts, B * D), lambda i: (i, 0)),
            input_output_aliases=io_aliases,
            compiler_params=compiler_params,
        )(x2, pe_table)
        return out2.reshape(S, B, D)

    return pl.pallas_call(
        _pe_add_kernel_3d,
        out_shape=jax.ShapeDtypeStruct((S, B, D), x.dtype),
        grid=grid,
        in_specs=[
            pl.BlockSpec((ts, B, D), lambda i: (i, 0, 0)),
            pl.BlockSpec((ts, 1, D), lambda i: (i, 0, 0)),
        ],
        out_specs=pl.BlockSpec((ts, B, D), lambda i: (i, 0, 0)),
        input_output_aliases=io_aliases,
        compiler_params=compiler_params,
    )(x, pe_table)


# --------------------------------------------------------------------------- #
# Self-test
# --------------------------------------------------------------------------- #
if __name__ == "__main__":
    key = jax.random.PRNGKey(0)

    # Case 1: small B, D not a multiple of 128 -> lane-collapsed (S, B*D) path.
    S1, B1, D1 = 8, 2, 32
    k1, k2 = jax.random.split(key)
    x1 = jax.random.normal(k1, (S1, B1, D1), dtype=jnp.float32)
    pe1 = make_sinusoidal_pe(max_len=64, d_model=D1, dtype=jnp.float32)
    y1 = jax.block_until_ready(input_pe(x1, pe1))
    ref1 = x1 + pe1[:S1]
    assert y1.shape == (S1, B1, D1)
    assert jnp.allclose(y1, ref1, atol=1e-6, rtol=1e-6)

    # Case 2: dense layout (B >= 8, D multiple of 128) -> native 3-D path.
    S2, B2, D2 = 16, 8, 128
    x2 = jax.random.normal(k2, (S2, B2, D2), dtype=jnp.float32)
    pe2 = make_sinusoidal_pe(max_len=32, d_model=D2, dtype=jnp.float32)
    y2 = jax.block_until_ready(input_pe(x2, pe2))
    ref2 = x2 + pe2[:S2]
    assert y2.shape == (S2, B2, D2)
    assert jnp.allclose(y2, ref2, atol=1e-6, rtol=1e-6)

    # In production prefer bf16 end-to-end (mem-bound op: half the bytes,
    # ~half the wall time) and fuse the +PE into the producing op.
    print("KERNEL_OK")
</pallas_src>

<mosaic_0001>
module attributes {stable_mosaic.version = 11 : i64} {
  func.func @_pe_add_kernel_2d(%arg0: i32, %arg1: memref<8x64xf32, #tpu.memory_space<vmem>>, %arg2: memref<8x1x32xf32, #tpu.memory_space<vmem>>, %arg3: memref<8x64xf32, #tpu.memory_space<vmem>>) attributes {dimension_semantics = [#tpu.dimension_semantics<parallel>], iteration_bounds = array<i64: 1>, scalar_prefetch = 0 : i64, scratch_operands = 0 : i64, tpu.core_type = #tpu.core_type<tc>, window_params = [{transform_indices = @transform_0, window_bounds = array<i64: 8, 64>}, {transform_indices = @transform_1, window_bounds = array<i64: 8, 1, 32>}, {transform_indices = @transform_2, window_bounds = array<i64: 8, 64>}]} {
    %c0 = arith.constant 0 : index
    %c0_0 = arith.constant 0 : index
    %c0_1 = arith.constant 0 : index
    %0 = vector.load %arg2[%c0, %c0_0, %c0_1] : memref<8x1x32xf32, #tpu.memory_space<vmem>>, vector<8x1x32xf32>
    %1 = vector.shape_cast %0 : vector<8x1x32xf32> to vector<8x32xf32>
    %c0_2 = arith.constant 0 : index
    %c0_3 = arith.constant 0 : index
    %2 = vector.load %arg1[%c0_2, %c0_3] : memref<8x64xf32, #tpu.memory_space<vmem>>, vector<8x64xf32>
    %3 = tpu.concatenate %1, %1 in 1 : vector<8x32xf32>, vector<8x32xf32> -> vector<8x64xf32>
    %4 = arith.addf %2, %3 : vector<8x64xf32>
    %c0_4 = arith.constant 0 : index
    %c0_5 = arith.constant 0 : index
    %5 = vector.load %arg3[%c0_4, %c0_5] : memref<8x64xf32, #tpu.memory_space<vmem>>, vector<8x64xf32>
    tpu.vector_store %arg3[%c0_4, %c0_5], %4 {strides = array<i32>} : memref<8x64xf32, #tpu.memory_space<vmem>>, vector<8x64xf32>,
    return
  }
  func.func @transform_0(%arg0: i32) -> (i32, i32) {
    %c0_i32 = arith.constant 0 : i32
    %c0_i32_0 = arith.constant 0 : i32
    return %arg0, %c0_i32 : i32, i32
  }
  func.func @transform_1(%arg0: i32) -> (i32, i32, i32) {
    %c0_i32 = arith.constant 0 : i32
    %c0_i32_0 = arith.constant 0 : i32
    %c0_i32_1 = arith.constant 0 : i32
    return %arg0, %c0_i32, %c0_i32_0 : i32, i32, i32
  }
  func.func @transform_2(%arg0: i32) -> (i32, i32) {
    %c0_i32 = arith.constant 0 : i32
    %c0_i32_0 = arith.constant 0 : i32
    return %arg0, %c0_i32 : i32, i32
  }
}

</mosaic_0001>

<llo_original>
// kernel: tpu_custom_call.1
$region0: #{tpu_custom_call.1}
  #allocation0 [shape = 'u32[]', space=smem, size = 0x4, offset = 0x4, fixed_abs, tag = 'smem constant byte address 0x4 - core index']
  #allocation1 [shape = 'u32[72,128]{1,0:T(1,128)}', space=vmem, size = 0x9000, scoped, tag = 'internal scratch']
  %s0 = inlined_call_operand.vmem [shape: f32[8,64], index: 0, kind: input, shape index: {}]
  %s1 = inlined_call_operand.vmem [shape: f32[64,1,32], index: 1, kind: input, shape index: {}]
  %s2 = inlined_call_operand.hbm [shape: f32[8,64], index: 2, kind: output, shape index: {}]
  %s3 = sld [smem:[#allocation0]]
  $region18: #{tpu_custom_call.1} parent=0
    _
  %s5 = ssub.s32 1, %s3
  %s6 = scalar_select 0, %s5, %s3
  $region1: #{tpu_custom_call.1} parent=0
    #allocation2 [shape = 'u8[4096]{0}', space=vmem, size = 0x1000, scoped, tag = 'output window, operand 0, single buffered']
    #allocation3 [shape = 's32[1]{0}', space=sflag, size = 0x4, scoped, tag = 'scoped memory for tpu_custom_call.1']
    %7 = vsyncpa [#allocation3], 0
    // Predicated region
    $region2: #{tpu_custom_call.1} parent=1 // pred_check
      _
    $region3: #{tpu_custom_call.1} parent=1 // pred_check_branch
      %9 = sbr.rel (0) target = $region5
    $region4: #{tpu_custom_call.1} parent=1 // pred_region
      _
    $region5: #{tpu_custom_call.1} parent=1 // pred_fallthru
      _
    // Predicated region
    $region6: #{tpu_custom_call.1} parent=1 // pred_check
      _
    $region7: #{tpu_custom_call.1} parent=1 // pred_check_branch
      %11 = sbr.rel (0) target = $region9
    $region8: #{tpu_custom_call.1} parent=1 // pred_region
      _
    $region9: #{tpu_custom_call.1} parent=1 // pred_fallthru
      _
    %v12 = vld [vmem:[%s1] sm:$0x1]
    %v13 = vld [vmem:[%s1 + $0x1] sm:$0x1]
    %v14 = vld [vmem:[%s1 + $0x2] sm:$0x1]
    %v15 = vld [vmem:[%s1 + $0x3] sm:$0x1]
    %v16 = vld [vmem:[%s1 + $0x4] sm:$0x1]
    %v17 = vld [vmem:[%s1 + $0x5] sm:$0x1]
    %v18 = vld [vmem:[%s1 + $0x6] sm:$0x1]
    %v19 = vld [vmem:[%s1 + $0x7] sm:$0x1]
    %v20 = vld [vmem:[%s0] sm:$0xff]
    %29 = vst [vmem:[#allocation1] ss:$9 sm:$0xff] %v12
    %s30 = scalar_lea.vmem [#allocation1], 1
    %31 = vst [vmem:[%s30] ss:$9 sm:$0xff] %v13
    %s32 = scalar_lea.vmem [#allocation1], 2
    %33 = vst [vmem:[%s32] ss:$9 sm:$0xff] %v14
    %s34 = scalar_lea.vmem [#allocation1], 3
    %35 = vst [vmem:[%s34] ss:$9 sm:$0xff] %v15
    %s36 = scalar_lea.vmem [#allocation1], 4
    %37 = vst [vmem:[%s36] ss:$9 sm:$0xff] %v16
    %s38 = scalar_lea.vmem [#allocation1], 5
    %39 = vst [vmem:[%s38] ss:$9 sm:$0xff] %v17
    %s40 = scalar_lea.vmem [#allocation1], 6
    %41 = vst [vmem:[%s40] ss:$9 sm:$0xff] %v18
    %s42 = scalar_lea.vmem [#allocation1], 7
    %43 = vst [vmem:[%s42] ss:$9 sm:$0xff] %v19
    %v44 = vld [vmem:[#allocation1] sm:$0xff]
    %46 = vst [vmem:[#allocation1] ss:$9 sm:$0xff] %v12
    %s47 = scalar_lea.vmem [#allocation1], 1
    %48 = vst [vmem:[%s47] ss:$9 sm:$0xff] %v13
    %s49 = scalar_lea.vmem [#allocation1], 2
    %50 = vst [vmem:[%s49] ss:$9 sm:$0xff] %v14
    %s51 = scalar_lea.vmem [#allocation1], 3
    %52 = vst [vmem:[%s51] ss:$9 sm:$0xff] %v15
    %s53 = scalar_lea.vmem [#allocation1], 4
    %54 = vst [vmem:[%s53] ss:$9 sm:$0xff] %v16
    %s55 = scalar_lea.vmem [#allocation1], 5
    %56 = vst [vmem:[%s55] ss:$9 sm:$0xff] %v17
    %s57 = scalar_lea.vmem [#allocation1], 6
    %58 = vst [vmem:[%s57] ss:$9 sm:$0xff] %v18
    %s59 = scalar_lea.vmem [#allocation1], 7
    %60 = vst [vmem:[%s59] ss:$9 sm:$0xff] %v19
    %v61 = vld [vmem:[#allocation1] sm:$0xff]
    %62 = vrot.lane.b32.xlu0 %v61, 32
    %v63 = vpop.permute.xlu0 %62
    %vm65 = vcmask 261120
    %v66 = vsel %vm65, %v44, %v63
    %v67 = vadd.f32 %v20, %v66
    %vm68 = vcmask 523264
    %69 = vst.msk [vmem:[#allocation2] sm:$0xff] %vm68, %v67
    // Predicated region
    $region10: #{tpu_custom_call.1} parent=1 // pred_check
      _
    $region11: #{tpu_custom_call.1} parent=1 // pred_check_branch
      %71 = sbr.rel (0) target = $region13
    $region12: #{tpu_custom_call.1} parent=1 // pred_region
      %73 = vsyncadd [#allocation3], 0
      %s75 = sshll.u32 [#allocation2], 4
      %s76 = int_to_ptr.vmem [resolvable:$true] %s75
      %s77 = sshll.u32 %s2, 4
      %s78 = int_to_ptr.hbm [resolvable:$true] %s77
      %80 = dma.vmem_to_hbm [thread:$0]  %s76, 128, %s78, [#allocation3]
    $region13: #{tpu_custom_call.1} parent=1 // pred_fallthru
      _
    // Predicated region
    $region14: #{tpu_custom_call.1} parent=1 // pred_check
      _
    $region15: #{tpu_custom_call.1} parent=1 // pred_check_branch
      %82 = sbr.rel (0) target = $region17
    $region16: #{tpu_custom_call.1} parent=1 // pred_region
      %84 = dma.done [#allocation3], 128
    $region17: #{tpu_custom_call.1} parent=1 // pred_fallthru
      _
    %85 = vsyncpa [#allocation3], 1

</llo_original>
